<compile_context>
chip_gen: v7x
topology: tpu7x:2x2x1
jax: 0.10.0
libtpu: 0.0.40
codegen_flags: <defaults>
</compile_context>

<pallas_src>
import functools

import jax
import jax.numpy as jnp
from jax import lax
from jax.experimental import pallas as pl
from jax.experimental.pallas import tpu as pltpu


# ----------------------------- helpers ---------------------------------------
def _croll(x, shift, axis):
    """Circular roll with jnp.roll semantics; shift normalized to [0, n)."""
    n = x.shape[axis]
    return pltpu.roll(x, shift % n, axis=axis)


def _largest_divisor_leq(n, cap):
    for d in range(min(n, cap), 0, -1):
        if n % d == 0:
            return d
    return 1


def _pick_groups_per_block(groups, w, max_cols):
    """How many (b,c) groups per lane block.  Block width = groups_per_block*w."""
    full_cols = groups * w
    if full_cols <= max_cols:
        return groups
    best = groups  # fallback: full width (always a legal block: equals array dim)
    for cand in range(groups - 1, 0, -1):
        cols = cand * w
        if groups % cand == 0 and cols % 128 == 0 and cols <= max_cols:
            best = cand
            break
    return best


# ----------------------------- Pallas kernel ---------------------------------
def _cornn_chunk_kernel(omega_ref, alpha_ref, hy0_ref, yseq_ref,
                        hy_sc, hz_sc, *, t_chunk, dt, w):
    """One grid step: advance the coRNN state by t_chunk time steps.

    Blocks:
      omega_ref/alpha_ref/hy0_ref : (H, COLS) f32, COLS = groups_per_block * W
      yseq_ref                    : (t_chunk, H, COLS)
      hy_sc/hz_sc                 : (H, COLS) f32 VMEM scratch; persists across
                                    the (innermost) time-chunk grid axis.
    """
    # Initialize state at the first time chunk of each column block.
    @pl.when(pl.program_id(1) == 0)
    def _():
        hy_sc[...] = hy0_ref[...]
        hz_sc[...] = jnp.zeros_like(hz_sc)

    rows, cols = hy_sc.shape
    omega = omega_ref[...]
    alpha = alpha_ref[...]

    # Column masks for the circular wrap of the W direction inside each
    # (batch, channel) group of width w (hoisted out of the time loop).
    col_in_group = lax.broadcasted_iota(jnp.int32, (rows, cols), 1) % w
    is_left_edge = col_in_group == 0
    is_right_edge = col_in_group == (w - 1)

    dt_f = jnp.float32(dt)
    hy = hy_sc[...]
    hz = hz_sc[...]

    for i in range(t_chunk):  # short static loop -> fully unrolled
        # circular 3x3 Laplacian via XLU rolls:
        #   lap[h,c] = hy[h-1,c] + hy[h+1,c] + hy[h,left(c)] + hy[h,right(c)] - 4*hy[h,c]
        up = _croll(hy, 1, 0)      # hy[h-1, :]
        down = _croll(hy, -1, 0)   # hy[h+1, :]
        left = jnp.where(is_left_edge,
                         _croll(hy, -(w - 1), 1),  # wrap: col j+w-1
                         _croll(hy, 1, 1))         # col j-1
        right = jnp.where(is_right_edge,
                          _croll(hy, w - 1, 1),    # wrap: col j-(w-1)
                          _croll(hy, -1, 1))       # col j+1
        lap = up + down + left + right - 4.0 * hy

        spring = jnp.tanh(lap)                                   # EUP
        hz = hz + dt_f * (spring - omega * hy - alpha * hz)      # VPU
        hy = hy + dt_f * hz
        yseq_ref[i] = hy.astype(yseq_ref.dtype)

    hy_sc[...] = hy
    hz_sc[...] = hz


def cornn_recurrence(omega, alpha, hy0, *, T, dt,
                     t_chunk_target=4, max_block_cols=2048,
                     out_dtype=jnp.float32):
    """omega/alpha/hy0: (B, C, H, W) f32.  Returns y_seq: (B, T, C, H, W)."""
    B, C, H, W = omega.shape
    assert omega.shape == alpha.shape == hy0.shape
    groups = B * C
    cols = groups * W

    t_chunk = _largest_divisor_leq(T, t_chunk_target)
    grid_t = T // t_chunk
    gpb = _pick_groups_per_block(groups, W, max_block_cols)
    block_cols = gpb * W
    grid_bc = groups // gpb

    def pack(a):  # (B, C, H, W) -> (H, B*C*W), lane-dense
        return a.transpose(2, 0, 1, 3).reshape(H, cols)

    kernel = functools.partial(_cornn_chunk_kernel, t_chunk=t_chunk, dt=dt, w=W)

    out_bytes = T * H * cols * jnp.dtype(out_dtype).itemsize
    cost = pl.CostEstimate(
        flops=12 * T * H * cols,
        transcendentals=T * H * cols,
        bytes_accessed=out_bytes + 3 * H * cols * 4,
    )

    y = pl.pallas_call(
        kernel,
        out_shape=jax.ShapeDtypeStruct((T, H, cols), out_dtype),
        grid_spec=pltpu.PrefetchScalarGridSpec(
            num_scalar_prefetch=0,
            grid=(grid_bc, grid_t),
            in_specs=[
                pl.BlockSpec((H, block_cols), lambda b, t: (0, b)),
                pl.BlockSpec((H, block_cols), lambda b, t: (0, b)),
                pl.BlockSpec((H, block_cols), lambda b, t: (0, b)),
            ],
            out_specs=pl.BlockSpec((t_chunk, H, block_cols),
                                   lambda b, t: (t, 0, b)),
            scratch_shapes=[pltpu.VMEM((H, block_cols), jnp.float32),
                            pltpu.VMEM((H, block_cols), jnp.float32)],
        ),
        compiler_params=pltpu.CompilerParams(
            dimension_semantics=("parallel", "arbitrary")),
        cost_estimate=cost,
    )(pack(omega), pack(alpha), pack(hy0))

    # (T, H, B*C*W) -> (B, T, C, H, W); one-shot XLA transpose of the streamed
    # result (kept so the kernel's stores stay lane-dense / unmasked).
    y = y.reshape(T, H, B, C, W).transpose(2, 0, 3, 1, 4)
    return y


# ----------------------------- JAX glue (encoders) ----------------------------
def conv3x3(x, w, b):
    """PyTorch Conv2d(k=3, pad=1, stride=1) equivalent.  x: NCHW, w: OIHW."""
    y = lax.conv_general_dilated(x, w, window_strides=(1, 1),
                                 padding=((1, 1), (1, 1)),
                                 dimension_numbers=('NCHW', 'OIHW', 'NCHW'))
    return y + b[None, :, None, None]


def run_encoder(x, params, final_act):
    h = x
    last = len(params) - 1
    for i, (w, b) in enumerate(params):
        h = conv3x3(h, w, b)
        h = final_act(h) if i == last else jax.nn.relu(h)
    return h


def init_conv(key, c_out, c_in):
    fan_in = c_in * 9
    std = (2.0 / fan_in) ** 0.5
    w = std * jax.random.normal(key, (c_out, c_in, 3, 3), jnp.float32)
    b = jnp.zeros((c_out,), jnp.float32)
    return w, b


class CoRNNSegmentationModelPallas:
    def __init__(self, key, N, c_in, c_mid, c_out,
                 n_classes=7, dt=0.5, T=50, image_size=32):
        assert N == image_size
        self.c_out, self.dt, self.T = c_out, dt, T
        self.spatial = image_size
        self.K = T // 2 + 1
        ks = jax.random.split(key, 10)
        self.omega_params = [init_conv(ks[0], c_mid, c_in),
                             init_conv(ks[1], c_mid, c_mid),
                             init_conv(ks[2], c_out, c_mid)]
        self.alpha_params = [init_conv(ks[3], c_mid, c_in),
                             init_conv(ks[4], c_mid, c_mid),
                             init_conv(ks[5], c_out, c_mid)]
        self.hy_params = [init_conv(ks[6], c_mid, c_in),
                          init_conv(ks[7], c_mid, c_mid),
                          init_conv(ks[8], c_mid, c_mid),
                          init_conv(ks[9], c_out, c_mid)]

    def encode(self, x):
        omega = run_encoder(x, self.omega_params, jax.nn.relu)   # (B, C, H, W)
        alpha = run_encoder(x, self.alpha_params, jax.nn.relu)
        hy0 = run_encoder(x, self.hy_params, jnp.tanh)
        return omega, alpha, hy0

    def __call__(self, x):
        omega, alpha, hy0 = self.encode(x)
        y_seq = cornn_recurrence(omega, alpha, hy0, T=self.T, dt=self.dt)
        # TODO(synk): reference forward calls `self.readout(self, y_seq, B, H, W)`
        # but `readout` is the string 'fft' (not callable) and fc_time is unused
        # in forward — logits are skipped; y_seq (B, T, C, H, W) is returned.
        return y_seq


# ----------------------------- reference (pure JAX) ---------------------------
def reference_recurrence(omega, alpha, hy0, *, T, dt):
    hy, hz = hy0, jnp.zeros_like(hy0)
    ys = []
    for _ in range(T):
        lap = (jnp.roll(hy, 1, axis=-2) + jnp.roll(hy, -1, axis=-2)
               + jnp.roll(hy, 1, axis=-1) + jnp.roll(hy, -1, axis=-1) - 4.0 * hy)
        hz = hz + dt * (jnp.tanh(lap) - omega * hy - alpha * hz)
        hy = hy + dt * hz
        ys.append(hy)
    return jnp.stack(ys, axis=1)   # (B, T, C, H, W)


if __name__ == "__main__":
    key = jax.random.PRNGKey(0)
    B, c_in, c_mid, c_out = 2, 1, 8, 4
    image_size, T, dt = 16, 8, 0.5

    kparam, kx = jax.random.split(key)
    model = CoRNNSegmentationModelPallas(kparam, N=image_size, c_in=c_in,
                                         c_mid=c_mid, c_out=c_out,
                                         dt=dt, T=T, image_size=image_size)
    x = jax.random.normal(kx, (B, c_in, image_size, image_size), jnp.float32)

    y_seq = model(x)
    jax.block_until_ready(y_seq)
    assert y_seq.shape == (B, T, c_out, image_size, image_size), y_seq.shape

    # sanity check of the Pallas recurrence against a pure-JAX reference
    omega, alpha, hy0 = model.encode(x)
    ref = reference_recurrence(omega, alpha, hy0, T=T, dt=dt)
    err = float(jnp.max(jnp.abs(y_seq - ref)))
    assert err < 1e-3, f"max abs err too large: {err}"

    print("KERNEL_OK")
</pallas_src>

<mosaic_0001>
module attributes {stable_mosaic.version = 11 : i64} {
  func.func @_cornn_chunk_kernel(%arg0: i32, %arg1: i32, %arg2: memref<16x128xf32, #tpu.memory_space<vmem>>, %arg3: memref<16x128xf32, #tpu.memory_space<vmem>>, %arg4: memref<16x128xf32, #tpu.memory_space<vmem>>, %arg5: memref<4x16x128xf32, #tpu.memory_space<vmem>>, %arg6: memref<16x128xf32, #tpu.memory_space<vmem>>, %arg7: memref<16x128xf32, #tpu.memory_space<vmem>>) attributes {dimension_semantics = [#tpu.dimension_semantics<parallel>, #tpu.dimension_semantics<arbitrary>], iteration_bounds = array<i64: 1, 2>, scalar_prefetch = 0 : i64, scratch_operands = 2 : i64, tpu.core_type = #tpu.core_type<tc>, window_params = [{transform_indices = @transform_0, window_bounds = array<i64: 16, 128>}, {transform_indices = @transform_1, window_bounds = array<i64: 16, 128>}, {transform_indices = @transform_2, window_bounds = array<i64: 16, 128>}, {transform_indices = @transform_3, window_bounds = array<i64: 4, 16, 128>}]} {
    %c0_i32 = arith.constant 0 : i32
    %0 = arith.cmpi eq, %arg1, %c0_i32 : i32
    %1 = arith.extui %0 : i1 to i32
    %c0_i32_0 = arith.constant 0 : i32
    %2 = arith.cmpi ne, %1, %c0_i32_0 : i32
    scf.if %2 {
      %c0_59 = arith.constant 0 : index
      %c0_60 = arith.constant 0 : index
      %142 = vector.load %arg4[%c0_59, %c0_60] : memref<16x128xf32, #tpu.memory_space<vmem>>, vector<16x128xf32>
      %c0_61 = arith.constant 0 : index
      %c0_62 = arith.constant 0 : index
      %143 = vector.load %arg6[%c0_61, %c0_62] : memref<16x128xf32, #tpu.memory_space<vmem>>, vector<16x128xf32>
      tpu.vector_store %arg6[%c0_61, %c0_62], %142 {strides = array<i32>} : memref<16x128xf32, #tpu.memory_space<vmem>>, vector<16x128xf32>,
      %cst_63 = arith.constant 0.000000e+00 : f32
      %144 = vector.broadcast %cst_63 : f32 to vector<16x128xf32>
      %c0_64 = arith.constant 0 : index
      %c0_65 = arith.constant 0 : index
      %145 = vector.load %arg7[%c0_64, %c0_65] : memref<16x128xf32, #tpu.memory_space<vmem>>, vector<16x128xf32>
      tpu.vector_store %arg7[%c0_64, %c0_65], %144 {strides = array<i32>} : memref<16x128xf32, #tpu.memory_space<vmem>>, vector<16x128xf32>,
    } else {
    }
    %c0 = arith.constant 0 : index
    %c0_1 = arith.constant 0 : index
    %3 = vector.load %arg2[%c0, %c0_1] : memref<16x128xf32, #tpu.memory_space<vmem>>, vector<16x128xf32>
    %c0_2 = arith.constant 0 : index
    %c0_3 = arith.constant 0 : index
    %4 = vector.load %arg3[%c0_2, %c0_3] : memref<16x128xf32, #tpu.memory_space<vmem>>, vector<16x128xf32>
    %5 = tpu.iota {dimensions = array<i32: 1>} : vector<16x128xi32>
    %c16_i32 = arith.constant 16 : i32
    %c0_i32_4 = arith.constant 0 : i32
    %6 = arith.cmpi eq, %c16_i32, %c0_i32_4 : i32
    %c1_i32 = arith.constant 1 : i32
    %7 = arith.select %6, %c1_i32, %c16_i32 : i32
    %8 = vector.broadcast %7 : i32 to vector<16x128xi32>
    %9 = arith.remsi %5, %8 : vector<16x128xi32>
    %c0_i32_5 = arith.constant 0 : i32
    %10 = vector.broadcast %c0_i32_5 : i32 to vector<16x128xi32>
    %11 = arith.cmpi ne, %9, %10 : vector<16x128xi32>
    %c0_i32_6 = arith.constant 0 : i32
    %12 = vector.broadcast %c0_i32_6 : i32 to vector<16x128xi32>
    %13 = arith.cmpi slt, %9, %12 : vector<16x128xi32>
    %c0_i32_7 = arith.constant 0 : i32
    %14 = arith.cmpi slt, %7, %c0_i32_7 : i32
    %15 = vector.broadcast %14 : i1 to vector<16x128xi1>
    %16 = vector.broadcast %15 : vector<16x128xi1> to vector<16x128xi1>
    %17 = arith.xori %13, %16 : vector<16x128xi1>
    %18 = arith.andi %17, %11 : vector<16x128xi1>
    %19 = vector.broadcast %7 : i32 to vector<16x128xi32>
    %20 = arith.addi %9, %19 : vector<16x128xi32>
    %21 = arith.select %18, %20, %9 : vector<16x128xi1>, vector<16x128xi32>
    %c0_i32_8 = arith.constant 0 : i32
    %22 = vector.broadcast %c0_i32_8 : i32 to vector<16x128xi32>
    %23 = arith.cmpi eq, %21, %22 : vector<16x128xi32>
    %c15_i32 = arith.constant 15 : i32
    %24 = vector.broadcast %c15_i32 : i32 to vector<16x128xi32>
    %25 = arith.cmpi eq, %21, %24 : vector<16x128xi32>
    %c0_9 = arith.constant 0 : index
    %c0_10 = arith.constant 0 : index
    %26 = vector.load %arg6[%c0_9, %c0_10] : memref<16x128xf32, #tpu.memory_space<vmem>>, vector<16x128xf32>
    %c0_11 = arith.constant 0 : index
    %c0_12 = arith.constant 0 : index
    %27 = vector.load %arg7[%c0_11, %c0_12] : memref<16x128xf32, #tpu.memory_space<vmem>>, vector<16x128xf32>
    %c1_i32_13 = arith.constant 1 : i32
    %28 = tpu.dynamic_rotate %26 by %c1_i32_13 dim 0 : vector<16x128xf32>, i32 -> vector<16x128xf32>
    %c15_i32_14 = arith.constant 15 : i32
    %29 = tpu.dynamic_rotate %26 by %c15_i32_14 dim 0 : vector<16x128xf32>, i32 -> vector<16x128xf32>
    %c113_i32 = arith.constant 113 : i32
    %30 = tpu.dynamic_rotate %26 by %c113_i32 dim 1 : vector<16x128xf32>, i32 -> vector<16x128xf32>
    %c1_i32_15 = arith.constant 1 : i32
    %31 = tpu.dynamic_rotate %26 by %c1_i32_15 dim 1 : vector<16x128xf32>, i32 -> vector<16x128xf32>
    %32 = arith.select %23, %30, %31 : vector<16x128xi1>, vector<16x128xf32>
    %c15_i32_16 = arith.constant 15 : i32
    %33 = tpu.dynamic_rotate %26 by %c15_i32_16 dim 1 : vector<16x128xf32>, i32 -> vector<16x128xf32>
    %c127_i32 = arith.constant 127 : i32
    %34 = tpu.dynamic_rotate %26 by %c127_i32 dim 1 : vector<16x128xf32>, i32 -> vector<16x128xf32>
    %35 = arith.select %25, %33, %34 : vector<16x128xi1>, vector<16x128xf32>
    %36 = arith.addf %28, %29 : vector<16x128xf32>
    %37 = arith.addf %36, %32 : vector<16x128xf32>
    %38 = arith.addf %37, %35 : vector<16x128xf32>
    %cst = arith.constant 4.000000e+00 : f32
    %39 = vector.broadcast %cst : f32 to vector<16x128xf32>
    %40 = arith.mulf %39, %26 : vector<16x128xf32>
    %41 = arith.subf %38, %40 : vector<16x128xf32>
    %42 = math.tanh %41 : vector<16x128xf32>
    %43 = arith.mulf %3, %26 : vector<16x128xf32>
    %44 = arith.subf %42, %43 : vector<16x128xf32>
    %45 = arith.mulf %4, %27 : vector<16x128xf32>
    %46 = arith.subf %44, %45 : vector<16x128xf32>
    %cst_17 = arith.constant 5.000000e-01 : f32
    %47 = vector.broadcast %cst_17 : f32 to vector<16x128xf32>
    %48 = arith.mulf %47, %46 : vector<16x128xf32>
    %49 = arith.addf %27, %48 : vector<16x128xf32>
    %cst_18 = arith.constant 5.000000e-01 : f32
    %50 = vector.broadcast %cst_18 : f32 to vector<16x128xf32>
    %51 = arith.mulf %50, %49 : vector<16x128xf32>
    %52 = arith.addf %26, %51 : vector<16x128xf32>
    %c0_19 = arith.constant 0 : index
    %c0_20 = arith.constant 0 : index
    %c0_21 = arith.constant 0 : index
    %53 = vector.load %arg5[%c0_19, %c0_20, %c0_21] : memref<4x16x128xf32, #tpu.memory_space<vmem>>, vector<1x16x128xf32>
    %54 = vector.shape_cast %53 : vector<1x16x128xf32> to vector<16x128xf32>
    %55 = vector.shape_cast %52 : vector<16x128xf32> to vector<1x16x128xf32>
    tpu.vector_store %arg5[%c0_19, %c0_20, %c0_21], %55 {strides = array<i32>} : memref<4x16x128xf32, #tpu.memory_space<vmem>>, vector<1x16x128xf32>,
    %c1_i32_22 = arith.constant 1 : i32
    %56 = tpu.dynamic_rotate %52 by %c1_i32_22 dim 0 : vector<16x128xf32>, i32 -> vector<16x128xf32>
    %c15_i32_23 = arith.constant 15 : i32
    %57 = tpu.dynamic_rotate %52 by %c15_i32_23 dim 0 : vector<16x128xf32>, i32 -> vector<16x128xf32>
    %c113_i32_24 = arith.constant 113 : i32
    %58 = tpu.dynamic_rotate %52 by %c113_i32_24 dim 1 : vector<16x128xf32>, i32 -> vector<16x128xf32>
    %c1_i32_25 = arith.constant 1 : i32
    %59 = tpu.dynamic_rotate %52 by %c1_i32_25 dim 1 : vector<16x128xf32>, i32 -> vector<16x128xf32>
    %60 = arith.select %23, %58, %59 : vector<16x128xi1>, vector<16x128xf32>
    %c15_i32_26 = arith.constant 15 : i32
    %61 = tpu.dynamic_rotate %52 by %c15_i32_26 dim 1 : vector<16x128xf32>, i32 -> vector<16x128xf32>
    %c127_i32_27 = arith.constant 127 : i32
    %62 = tpu.dynamic_rotate %52 by %c127_i32_27 dim 1 : vector<16x128xf32>, i32 -> vector<16x128xf32>
    %63 = arith.select %25, %61, %62 : vector<16x128xi1>, vector<16x128xf32>
    %64 = arith.addf %56, %57 : vector<16x128xf32>
    %65 = arith.addf %64, %60 : vector<16x128xf32>
    %66 = arith.addf %65, %63 : vector<16x128xf32>
    %cst_28 = arith.constant 4.000000e+00 : f32
    %67 = vector.broadcast %cst_28 : f32 to vector<16x128xf32>
    %68 = arith.mulf %67, %52 : vector<16x128xf32>
    %69 = arith.subf %66, %68 : vector<16x128xf32>
    %70 = math.tanh %69 : vector<16x128xf32>
    %71 = arith.mulf %3, %52 : vector<16x128xf32>
    %72 = arith.subf %70, %71 : vector<16x128xf32>
    %73 = arith.mulf %4, %49 : vector<16x128xf32>
    %74 = arith.subf %72, %73 : vector<16x128xf32>
    %cst_29 = arith.constant 5.000000e-01 : f32
    %75 = vector.broadcast %cst_29 : f32 to vector<16x128xf32>
    %76 = arith.mulf %75, %74 : vector<16x128xf32>
    %77 = arith.addf %49, %76 : vector<16x128xf32>
    %cst_30 = arith.constant 5.000000e-01 : f32
    %78 = vector.broadcast %cst_30 : f32 to vector<16x128xf32>
    %79 = arith.mulf %78, %77 : vector<16x128xf32>
    %80 = arith.addf %52, %79 : vector<16x128xf32>
    %c1 = arith.constant 1 : index
    %c0_31 = arith.constant 0 : index
    %c0_32 = arith.constant 0 : index
    %81 = vector.load %arg5[%c1, %c0_31, %c0_32] : memref<4x16x128xf32, #tpu.memory_space<vmem>>, vector<1x16x128xf32>
    %82 = vector.shape_cast %81 : vector<1x16x128xf32> to vector<16x128xf32>
    %83 = vector.shape_cast %80 : vector<16x128xf32> to vector<1x16x128xf32>
    tpu.vector_store %arg5[%c1, %c0_31, %c0_32], %83 {strides = array<i32>} : memref<4x16x128xf32, #tpu.memory_space<vmem>>, vector<1x16x128xf32>,
    %c1_i32_33 = arith.constant 1 : i32
    %84 = tpu.dynamic_rotate %80 by %c1_i32_33 dim 0 : vector<16x128xf32>, i32 -> vector<16x128xf32>
    %c15_i32_34 = arith.constant 15 : i32
    %85 = tpu.dynamic_rotate %80 by %c15_i32_34 dim 0 : vector<16x128xf32>, i32 -> vector<16x128xf32>
    %c113_i32_35 = arith.constant 113 : i32
    %86 = tpu.dynamic_rotate %80 by %c113_i32_35 dim 1 : vector<16x128xf32>, i32 -> vector<16x128xf32>
    %c1_i32_36 = arith.constant 1 : i32
    %87 = tpu.dynamic_rotate %80 by %c1_i32_36 dim 1 : vector<16x128xf32>, i32 -> vector<16x128xf32>
    %88 = arith.select %23, %86, %87 : vector<16x128xi1>, vector<16x128xf32>
    %c15_i32_37 = arith.constant 15 : i32
    %89 = tpu.dynamic_rotate %80 by %c15_i32_37 dim 1 : vector<16x128xf32>, i32 -> vector<16x128xf32>
    %c127_i32_38 = arith.constant 127 : i32
    %90 = tpu.dynamic_rotate %80 by %c127_i32_38 dim 1 : vector<16x128xf32>, i32 -> vector<16x128xf32>
    %91 = arith.select %25, %89, %90 : vector<16x128xi1>, vector<16x128xf32>
    %92 = arith.addf %84, %85 : vector<16x128xf32>
    %93 = arith.addf %92, %88 : vector<16x128xf32>
    %94 = arith.addf %93, %91 : vector<16x128xf32>
    %cst_39 = arith.constant 4.000000e+00 : f32
    %95 = vector.broadcast %cst_39 : f32 to vector<16x128xf32>
    %96 = arith.mulf %95, %80 : vector<16x128xf32>
    %97 = arith.subf %94, %96 : vector<16x128xf32>
    %98 = math.tanh %97 : vector<16x128xf32>
    %99 = arith.mulf %3, %80 : vector<16x128xf32>
    %100 = arith.subf %98, %99 : vector<16x128xf32>
    %101 = arith.mulf %4, %77 : vector<16x128xf32>
    %102 = arith.subf %100, %101 : vector<16x128xf32>
    %cst_40 = arith.constant 5.000000e-01 : f32
    %103 = vector.broadcast %cst_40 : f32 to vector<16x128xf32>
    %104 = arith.mulf %103, %102 : vector<16x128xf32>
    %105 = arith.addf %77, %104 : vector<16x128xf32>
    %cst_41 = arith.constant 5.000000e-01 : f32
    %106 = vector.broadcast %cst_41 : f32 to vector<16x128xf32>
    %107 = arith.mulf %106, %105 : vector<16x128xf32>
    %108 = arith.addf %80, %107 : vector<16x128xf32>
    %c2 = arith.constant 2 : index
    %c0_42 = arith.constant 0 : index
    %c0_43 = arith.constant 0 : index
    %109 = vector.load %arg5[%c2, %c0_42, %c0_43] : memref<4x16x128xf32, #tpu.memory_space<vmem>>, vector<1x16x128xf32>
    %110 = vector.shape_cast %109 : vector<1x16x128xf32> to vector<16x128xf32>
    %111 = vector.shape_cast %108 : vector<16x128xf32> to vector<1x16x128xf32>
    tpu.vector_store %arg5[%c2, %c0_42, %c0_43], %111 {strides = array<i32>} : memref<4x16x128xf32, #tpu.memory_space<vmem>>, vector<1x16x128xf32>,
    %c1_i32_44 = arith.constant 1 : i32
    %112 = tpu.dynamic_rotate %108 by %c1_i32_44 dim 0 : vector<16x128xf32>, i32 -> vector<16x128xf32>
    %c15_i32_45 = arith.constant 15 : i32
    %113 = tpu.dynamic_rotate %108 by %c15_i32_45 dim 0 : vector<16x128xf32>, i32 -> vector<16x128xf32>
    %c113_i32_46 = arith.constant 113 : i32
    %114 = tpu.dynamic_rotate %108 by %c113_i32_46 dim 1 : vector<16x128xf32>, i32 -> vector<16x128xf32>
    %c1_i32_47 = arith.constant 1 : i32
    %115 = tpu.dynamic_rotate %108 by %c1_i32_47 dim 1 : vector<16x128xf32>, i32 -> vector<16x128xf32>
    %116 = arith.select %23, %114, %115 : vector<16x128xi1>, vector<16x128xf32>
    %c15_i32_48 = arith.constant 15 : i32
    %117 = tpu.dynamic_rotate %108 by %c15_i32_48 dim 1 : vector<16x128xf32>, i32 -> vector<16x128xf32>
    %c127_i32_49 = arith.constant 127 : i32
    %118 = tpu.dynamic_rotate %108 by %c127_i32_49 dim 1 : vector<16x128xf32>, i32 -> vector<16x128xf32>
    %119 = arith.select %25, %117, %118 : vector<16x128xi1>, vector<16x128xf32>
    %120 = arith.addf %112, %113 : vector<16x128xf32>
    %121 = arith.addf %120, %116 : vector<16x128xf32>
    %122 = arith.addf %121, %119 : vector<16x128xf32>
    %cst_50 = arith.constant 4.000000e+00 : f32
    %123 = vector.broadcast %cst_50 : f32 to vector<16x128xf32>
    %124 = arith.mulf %123, %108 : vector<16x128xf32>
    %125 = arith.subf %122, %124 : vector<16x128xf32>
    %126 = math.tanh %125 : vector<16x128xf32>
    %127 = arith.mulf %3, %108 : vector<16x128xf32>
    %128 = arith.subf %126, %127 : vector<16x128xf32>
    %129 = arith.mulf %4, %105 : vector<16x128xf32>
    %130 = arith.subf %128, %129 : vector<16x128xf32>
    %cst_51 = arith.constant 5.000000e-01 : f32
    %131 = vector.broadcast %cst_51 : f32 to vector<16x128xf32>
    %132 = arith.mulf %131, %130 : vector<16x128xf32>
    %133 = arith.addf %105, %132 : vector<16x128xf32>
    %cst_52 = arith.constant 5.000000e-01 : f32
    %134 = vector.broadcast %cst_52 : f32 to vector<16x128xf32>
    %135 = arith.mulf %134, %133 : vector<16x128xf32>
    %136 = arith.addf %108, %135 : vector<16x128xf32>
    %c3 = arith.constant 3 : index
    %c0_53 = arith.constant 0 : index
    %c0_54 = arith.constant 0 : index
    %137 = vector.load %arg5[%c3, %c0_53, %c0_54] : memref<4x16x128xf32, #tpu.memory_space<vmem>>, vector<1x16x128xf32>
    %138 = vector.shape_cast %137 : vector<1x16x128xf32> to vector<16x128xf32>
    %139 = vector.shape_cast %136 : vector<16x128xf32> to vector<1x16x128xf32>
    tpu.vector_store %arg5[%c3, %c0_53, %c0_54], %139 {strides = array<i32>} : memref<4x16x128xf32, #tpu.memory_space<vmem>>, vector<1x16x128xf32>,
    %c0_55 = arith.constant 0 : index
    %c0_56 = arith.constant 0 : index
    %140 = vector.load %arg6[%c0_55, %c0_56] : memref<16x128xf32, #tpu.memory_space<vmem>>, vector<16x128xf32>
    tpu.vector_store %arg6[%c0_55, %c0_56], %136 {strides = array<i32>} : memref<16x128xf32, #tpu.memory_space<vmem>>, vector<16x128xf32>,
    %c0_57 = arith.constant 0 : index
    %c0_58 = arith.constant 0 : index
    %141 = vector.load %arg7[%c0_57, %c0_58] : memref<16x128xf32, #tpu.memory_space<vmem>>, vector<16x128xf32>
    tpu.vector_store %arg7[%c0_57, %c0_58], %133 {strides = array<i32>} : memref<16x128xf32, #tpu.memory_space<vmem>>, vector<16x128xf32>,
    return
  }
  func.func @transform_0(%arg0: i32, %arg1: i32) -> (i32, i32) {
    %c0_i32 = arith.constant 0 : i32
    %c0_i32_0 = arith.constant 0 : i32
    return %c0_i32, %arg0 : i32, i32
  }
  func.func @transform_1(%arg0: i32, %arg1: i32) -> (i32, i32) {
    %c0_i32 = arith.constant 0 : i32
    %c0_i32_0 = arith.constant 0 : i32
    return %c0_i32, %arg0 : i32, i32
  }
  func.func @transform_2(%arg0: i32, %arg1: i32) -> (i32, i32) {
    %c0_i32 = arith.constant 0 : i32
    %c0_i32_0 = arith.constant 0 : i32
    return %c0_i32, %arg0 : i32, i32
  }
  func.func @transform_3(%arg0: i32, %arg1: i32) -> (i32, i32, i32) {
    %c0_i32 = arith.constant 0 : i32
    %c0_i32_0 = arith.constant 0 : i32
    return %arg1, %c0_i32, %arg0 : i32, i32, i32
  }
}

</mosaic_0001>

<llo_original>
// kernel: tpu_custom_call.1
$region0: #{tpu_custom_call.1}
  #allocation0 [shape = 'u32[]', space=smem, size = 0x4, offset = 0x4, fixed_abs, tag = 'smem constant byte address 0x4 - core index']
  #allocation1 [shape = 'u32[144,128]{1,0:T(1,128)}', space=vmem, size = 0x12000, scoped, tag = 'internal scratch']
  #allocation2 [shape = 'f32[16,128]{1,0:T(8,128)}', space=vmem, size = 0x2000, scoped, tag = 'scratch operand']
  #allocation3 [shape = 'f32[16,128]{1,0:T(8,128)}', space=vmem, size = 0x2000, scoped, tag = 'scratch operand']
  %s0 = inlined_call_operand.hbm [shape: f32[16,128], index: 0, kind: input, shape index: {}]
  %s1 = inlined_call_operand.hbm [shape: f32[16,128], index: 1, kind: input, shape index: {}]
  %s2 = inlined_call_operand.hbm [shape: f32[16,128], index: 2, kind: input, shape index: {}]
  %s3 = inlined_call_operand.hbm [shape: f32[8,16,128], index: 3, kind: output, shape index: {}]
  %s4 = sld [smem:[#allocation0]]
  $region61: #{tpu_custom_call.1} parent=0
    _
  %s6 = ssub.s32 1, %s4
  %s7 = scalar_select 0, %s6, %s4
  $region1: #{tpu_custom_call.1} parent=0
    #allocation4 [shape = 'u8[8192]{0}', space=vmem, size = 0x2000, scoped, tag = 'input window, operand 0, single buffered']
    #allocation5 [shape = 's32[2]{0}', space=sflag, size = 0x8, scoped, tag = 'scoped memory for tpu_custom_call.1']
    #allocation6 [shape = 's32[2]{0}', space=sflag, size = 0x8, scoped, tag = 'scoped memory for tpu_custom_call.1']
    #allocation7 [shape = 'u8[8192]{0}', space=vmem, size = 0x2000, scoped, tag = 'input window, operand 1, single buffered']
    #allocation8 [shape = 's32[1]{0}', space=sflag, size = 0x4, scoped, tag = 'scoped memory for tpu_custom_call.1']
    #allocation9 [shape = 'u8[8192]{0}', space=vmem, size = 0x2000, scoped, tag = 'input window, operand 2, single buffered']
    #allocation10 [shape = 'u8[65536]{0}', space=vmem, size = 0x10000, scoped, tag = 'output window, operand 0']
    %8 = vsyncpa [#allocation5], 0
    %9 = vsyncpa [#allocation8], 0
    %10 = vsyncpa [#allocation6], 0
    %s11 = scalar_lea.sflag [#allocation6], 1
    %12 = vsyncpa %s11, 0
    loop: start=0, step=1, limit=4
    $region2: #{tpu_custom_call.1} parent=1 // loop_pre_header
      _
    $region3: #{tpu_custom_call.1} parent=1 // loop_header
      %s14 = sphi 0, %s18
      %p15 = scmp.ge.s32.totalorder %s14, 4
      %s21 = sphi 0, %s33
      %s22 = sphi 0, %s29
      %s23 = sphi 0, %s21
      %s24 = sphi 0, %s22
      %s25 = sphi 0, %s23
      %s26 = sphi 0, %s24
      %s36 = sphi 0, %s38
      %s39 = sphi 0, %s36
      %s40 = sphi 0, %s39
      %s56 = sphi 0, %s40
      %s62 = sphi 0, %s64
      %s65 = sphi 0, %s62
      %s66 = sphi 0, %s65
      %s82 = sphi 0, %s66
      %s88 = sphi 0, %s90
      %s91 = sphi 0, %s88
      %s92 = sphi 0, %s91
      %s108 = sphi 0, %s92
      %s116 = sphi 0, %s118
      %s119 = sphi 0, %s116
      %s120 = sphi 0, %s119
      %s136 = sphi 0, %s120
    $region4: #{tpu_custom_call.1} parent=1 // loop_header_branch
      %17 = sbr.rel (%p15) target = $region8
    $region5: #{tpu_custom_call.1} parent=1 // loop_body
      %s19 = ssub.s32 %s14, 1
      %s20 = ssub.s32 %s14, 2
      %s27 = sadd.s32 1, %s22
      %p28 = scmp.ge.s32.totalorder %s27, 2
      %s29 = scalar_select %p28, 0, %s27
      %s30 = sadd.s32 1, %s21
      %s31 = scalar_select %p28, %s30, %s21
      %p32 = scmp.ge.s32.totalorder %s31, 1
      %s33 = scalar_select %p32, 0, %s31
      %s34 = ssub.s32 %s21, %s33
      %p35 = scmp.eq.s32.totalorder %s34, 0
      %s37 = sadd.s32 %s36, 1
      %s38 = scalar_select %p35, %s36, %s37
      %p41 = pneg %p35
      %p42 = scmp.eq.s32.totalorder %s14, 1
      %p43 = por %p41, %p42
      %p44 = scmp.ne.s32.totalorder %s36, %s39
      %p45 = scmp.eq.s32.totalorder %s14, 0
      %p46 = por %p44, %p45
      %p47 = scmp.ne.s32.totalorder %s36, %s39
      %p48 = scmp.eq.s32.totalorder %s19, 1
      %p49 = por %p47, %p48
      %p50 = scmp.ne.s32.totalorder %s39, %s40
      %p51 = scmp.eq.s32.totalorder %s19, 0
      %p52 = por %p50, %p51
      %p53 = scmp.ne.s32.totalorder %s39, %s40
      %p54 = scmp.eq.s32.totalorder %s20, 1
      %p55 = por %p53, %p54
      %p57 = scmp.ne.s32.totalorder %s40, %s56
      %p58 = scmp.eq.s32.totalorder %s20, 0
      %p59 = por %p57, %p58
      %s60 = ssub.s32 %s21, %s33
      %p61 = scmp.eq.s32.totalorder %s60, 0
      %s63 = sadd.s32 %s62, 1
      %s64 = scalar_select %p61, %s62, %s63
      %p67 = pneg %p61
      %p68 = scmp.eq.s32.totalorder %s14, 1
      %p69 = por %p67, %p68
      %p70 = scmp.ne.s32.totalorder %s62, %s65
      %p71 = scmp.eq.s32.totalorder %s14, 0
      %p72 = por %p70, %p71
      %p73 = scmp.ne.s32.totalorder %s62, %s65
      %p74 = scmp.eq.s32.totalorder %s19, 1
      %p75 = por %p73, %p74
      %p76 = scmp.ne.s32.totalorder %s65, %s66
      %p77 = scmp.eq.s32.totalorder %s19, 0
      %p78 = por %p76, %p77
      %p79 = scmp.ne.s32.totalorder %s65, %s66
      %p80 = scmp.eq.s32.totalorder %s20, 1
      %p81 = por %p79, %p80
      %p83 = scmp.ne.s32.totalorder %s66, %s82
      %p84 = scmp.eq.s32.totalorder %s20, 0
      %p85 = por %p83, %p84
      %s86 = ssub.s32 %s21, %s33
      %p87 = scmp.eq.s32.totalorder %s86, 0
      %s89 = sadd.s32 %s88, 1
      %s90 = scalar_select %p87, %s88, %s89
      %p93 = pneg %p87
      %p94 = scmp.eq.s32.totalorder %s14, 1
      %p95 = por %p93, %p94
      %p96 = scmp.ne.s32.totalorder %s88, %s91
      %p97 = scmp.eq.s32.totalorder %s14, 0
      %p98 = por %p96, %p97
      %p99 = scmp.ne.s32.totalorder %s88, %s91
      %p100 = scmp.eq.s32.totalorder %s19, 1
      %p101 = por %p99, %p100
      %p102 = scmp.ne.s32.totalorder %s91, %s92
      %p103 = scmp.eq.s32.totalorder %s19, 0
      %p104 = por %p102, %p103
      %p105 = scmp.ne.s32.totalorder %s91, %s92
      %p106 = scmp.eq.s32.totalorder %s20, 1
      %p107 = por %p105, %p106
      %p109 = scmp.ne.s32.totalorder %s92, %s108
      %p110 = scmp.eq.s32.totalorder %s20, 0
      %p111 = por %p109, %p110
      %s112 = ssub.s32 %s22, %s29
      %s113 = ssub.s32 %s21, %s33
      %s114 = sor.u32 %s112, %s113
      %p115 = scmp.eq.s32.totalorder %s114, 0
      %s117 = sadd.s32 %s116, 1
      %s118 = scalar_select %p115, %s116, %s117
      %p121 = pneg %p115
      %p122 = scmp.eq.s32.totalorder %s14, 1
      %p123 = por %p121, %p122
      %p124 = scmp.ne.s32.totalorder %s116, %s119
      %p125 = scmp.eq.s32.totalorder %s14, 0
      %p126 = por %p124, %p125
      %p127 = scmp.ne.s32.totalorder %s116, %s119
      %p128 = scmp.eq.s32.totalorder %s19, 1
      %p129 = por %p127, %p128
      %p130 = scmp.ne.s32.totalorder %s119, %s120
      %p131 = scmp.eq.s32.totalorder %s19, 0
      %p132 = por %p130, %p131
      %p133 = scmp.ne.s32.totalorder %s119, %s120
      %p134 = scmp.eq.s32.totalorder %s20, 1
      %p135 = por %p133, %p134
      %p137 = scmp.ne.s32.totalorder %s120, %s136
      %p138 = scmp.eq.s32.totalorder %s20, 0
      %p139 = por %p137, %p138
      %p140 = scmp.le.s32.totalorder 1, %s14
      %p141 = scmp.lt.s32.totalorder %s14, 3
      %p142 = pnand %p140, %p141
      %p143 = pneg %p142
      // Predicated region
      $region9: #{tpu_custom_call.1} parent=5 // pred_check
        _
      $region10: #{tpu_custom_call.1} parent=5 // pred_check_branch
        %145 = sbr.rel (%p142) target = $region12
      $region11: #{tpu_custom_call.1} parent=5 // pred_region
        %s146 = ssub.s32 %s14, 1
        // Predicated region
        $region13: #{tpu_custom_call.1} parent=11 // pred_check
          %p147 = pneg %p52
        $region14: #{tpu_custom_call.1} parent=11 // pred_check_branch
          %149 = sbr.rel (%p147) target = $region16
        $region15: #{tpu_custom_call.1} parent=11 // pred_region
          %s151 = ssub.s32 256, 256
          %152 = vsyncadd [#allocation5], %s151
          %s153 = smul.addr %s23, 128
          %s154 = scalar_lea.hbm %s0, %s153
          %s155 = sshll.u32 [#allocation4], 4
          %s156 = int_to_ptr.vmem [resolvable:$true] %s155
          %161 = dma.hbm_to_vmem [thread:$0]  %s154, 256, %s156, [#allocation5], 128, 128, 8
        $region16: #{tpu_custom_call.1} parent=11 // pred_fallthru
          _
        // Predicated region
        $region17: #{tpu_custom_call.1} parent=11 // pred_check
          %p162 = pneg %p78
        $region18: #{tpu_custom_call.1} parent=11 // pred_check_branch
          %164 = sbr.rel (%p162) target = $region20
        $region19: #{tpu_custom_call.1} parent=11 // pred_region
          %s166 = ssub.s32 256, 256
          %167 = vsyncadd [#allocation8], %s166
          %s168 = smul.addr %s23, 128
          %s169 = scalar_lea.hbm %s1, %s168
          %s170 = sshll.u32 [#allocation7], 4
          %s171 = int_to_ptr.vmem [resolvable:$true] %s170
          %176 = dma.hbm_to_vmem [thread:$0]  %s169, 256, %s171, [#allocation8], 128, 128, 8
        $region20: #{tpu_custom_call.1} parent=11 // pred_fallthru
          _
        // Predicated region
        $region21: #{tpu_custom_call.1} parent=11 // pred_check
          %p177 = pneg %p104
        $region22: #{tpu_custom_call.1} parent=11 // pred_check_branch
          %179 = sbr.rel (%p177) target = $region24
        $region23: #{tpu_custom_call.1} parent=11 // pred_region
          %s181 = ssub.s32 256, 256
          %182 = vsyncadd [#allocation8], %s181
          %s183 = smul.addr %s23, 128
          %s184 = scalar_lea.hbm %s2, %s183
          %s185 = sshll.u32 [#allocation9], 4
          %s186 = int_to_ptr.vmem [resolvable:$true] %s185
          %191 = dma.hbm_to_vmem [thread:$0]  %s184, 256, %s186, [#allocation8], 128, 128, 8
        $region24: #{tpu_custom_call.1} parent=11 // pred_fallthru
          _
      $region12: #{tpu_custom_call.1} parent=5 // pred_fallthru
        _
      %p192 = scmp.lt.s32.totalorder %s14, 2
      // Predicated region
      $region25: #{tpu_custom_call.1} parent=5 // pred_check
        %p193 = pneg %p192
      $region26: #{tpu_custom_call.1} parent=5 // pred_check_branch
        %195 = sbr.rel (%p193) target = $region28
      $region27: #{tpu_custom_call.1} parent=5 // pred_region
        _
      $region28: #{tpu_custom_call.1} parent=5 // pred_fallthru
        _
      %p196 = scmp.le.s32.totalorder 1, %s14
      %p197 = scmp.lt.s32.totalorder %s14, 3
      %p198 = pnand %p196, %p197
      %p199 = pneg %p198
      // Predicated region
      $region29: #{tpu_custom_call.1} parent=5 // pred_check
        _
      $region30: #{tpu_custom_call.1} parent=5 // pred_check_branch
        %201 = sbr.rel (%p198) target = $region32
      $region31: #{tpu_custom_call.1} parent=5 // pred_region
        %s202 = ssub.s32 %s14, 1
        // Predicated region
        $region33: #{tpu_custom_call.1} parent=31 // pred_check
          %p203 = pneg %p52
        $region34: #{tpu_custom_call.1} parent=31 // pred_check_branch
          %205 = sbr.rel (%p203) target = $region36
        $region35: #{tpu_custom_call.1} parent=31 // pred_region
          %206 = dma.done [#allocation5], 256
        $region36: #{tpu_custom_call.1} parent=31 // pred_fallthru
          _
        // Predicated region
        $region37: #{tpu_custom_call.1} parent=31 // pred_check
          %p207 = pneg %p78
        $region38: #{tpu_custom_call.1} parent=31 // pred_check_branch
          %209 = sbr.rel (%p207) target = $region40
        $region39: #{tpu_custom_call.1} parent=31 // pred_region
          %210 = dma.done [#allocation8], 256
        $region40: #{tpu_custom_call.1} parent=31 // pred_fallthru
          _
        // Predicated region
        $region41: #{tpu_custom_call.1} parent=31 // pred_check
          %p211 = pneg %p104
        $region42: #{tpu_custom_call.1} parent=31 // pred_check_branch
          %213 = sbr.rel (%p211) target = $region44
        $region43: #{tpu_custom_call.1} parent=31 // pred_region
          %214 = dma.done [#allocation8], 256
        $region44: #{tpu_custom_call.1} parent=31 // pred_fallthru
          _
        %p215 = pneg %p52
        %p216 = pneg %p49
        %p217 = pneg %p78
        %p218 = pneg %p75
        %p219 = pneg %p104
        %p220 = pneg %p101
        %p221 = pneg %p132
        %p222 = pneg %p129
        %s223 = sand.u32 %s119, 1
        %s224 = scalar_lea.sflag [#allocation6], %s223
        %s225 = sand.u32 %s119, 1
        %s226 = smul.addr %s225, 64
        %s227 = scalar_lea.vmem [#allocation10], %s226
        %s228 = smul.u32 4, %s24
        %p229 = scmp.eq.s32.totalorder %s24, 0
        // Predicated region
        $region45: #{tpu_custom_call.1} parent=31 // pred_check
          %p230 = pneg %p229
        $region46: #{tpu_custom_call.1} parent=31 // pred_check_branch
          %232 = sbr.rel (%p230) target = $region48
        $region47: #{tpu_custom_call.1} parent=31 // pred_region
          %v233 = vld [vmem:[#allocation9] sm:$0xff]
          %v234 = vld [vmem:[#allocation9 + $0x8] sm:$0xff]
          %235 = vst [vmem:[#allocation2] sm:$0xff] %v233
          %236 = vst [vmem:[#allocation2 + $0x8] sm:$0xff] %v234
          %237 = vst [vmem:[#allocation3] sm:$0xff] 0.0
          %238 = vst [vmem:[#allocation3 + $0x8] sm:$0xff] 0.0
        $region48: #{tpu_custom_call.1} parent=31 // pred_fallthru
          _
        %v239 = vld [vmem:[#allocation4] sm:$0xff]
        %v240 = vld [vmem:[#allocation4 + $0x8] sm:$0xff]
        %v241 = vld [vmem:[#allocation7] sm:$0xff]
        %v242 = vld [vmem:[#allocation7 + $0x8] sm:$0xff]
        %v243 = vlaneseq
        %v244 = vand.u32 %v243, 127
        %vm245 = vcmp.lt.s32.totalorder %v244, 0
        %v246 = vsub.s32 0, %v244
        %v247 = vsel %vm245, %v246, %v244
        %v248 = vshrl.u32 %v247, 4
        %v249 = vand.u32 %v247, 15
        %v250 = vsub.s32 0, %v249
        %v251 = vsel %vm245, %v250, %v249
        %vm252 = vcmp.ne.s32.totalorder %v251, 0
        %vm253 = vcmp.lt.s32.totalorder %v251, 0
        %vm254 = vmand %vm253, %vm252
        %v255 = vadd.s32 %v251, 16
        %v256 = vsel %vm254, %v255, %v251
        %vm257 = vcmp.eq.s32.totalorder %v256, 0
        %vm258 = vcmp.eq.s32.totalorder %v256, 15
        %v259 = vld [vmem:[#allocation2] sm:$0xff]
        %v260 = vld [vmem:[#allocation2 + $0x8] sm:$0xff]
        %v261 = vld [vmem:[#allocation3] sm:$0xff]
        %v262 = vld [vmem:[#allocation3 + $0x8] sm:$0xff]
        %v263 = vrot.slane %v259, 7
        %v264 = vrot.slane %v260, 7
        %v265 = vlaneseq
        %v266 = vshrl.u32 %v265, 7
        %vm267 = vcmp.lt.s32.totalorder %v266, 1
        %v268 = vsel %vm267, %v263, %v264
        %v269 = vsel %vm267, %v264, %v263
        %v270 = vrot.slane %v259, 1
        %v271 = vrot.slane %v260, 1
        %vm272 = vcmp.lt.s32.totalorder %v266, 7
        %v273 = vsel %vm272, %v270, %v271
        %v274 = vsel %vm272, %v271, %v270
        %275 = vrot.lane.b32.xlu0 %v259, 113
        %v276 = vpop.permute.xlu0 %275
        %277 = vrot.lane.b32.xlu0 %v260, 113
        %v278 = vpop.permute.xlu0 %277
        %279 = vrot.lane.b32.xlu0 %v259, 1
        %v280 = vpop.permute.xlu0 %279
        %281 = vrot.lane.b32.xlu0 %v260, 1
        %v282 = vpop.permute.xlu0 %281
        %v283 = vsel %vm257, %v276, %v280
        %v284 = vsel %vm257, %v278, %v282
        %285 = vrot.lane.b32.xlu0 %v259, 15
        %v286 = vpop.permute.xlu0 %285
        %287 = vrot.lane.b32.xlu0 %v260, 15
        %v288 = vpop.permute.xlu0 %287
        %289 = vrot.lane.b32.xlu0 %v259, 127
        %v290 = vpop.permute.xlu0 %289
        %291 = vrot.lane.b32.xlu0 %v260, 127
        %v292 = vpop.permute.xlu0 %291
        %v293 = vsel %vm258, %v286, %v290
        %v294 = vsel %vm258, %v288, %v292
        %v295 = vadd.f32 %v269, %v273
        %v296 = vadd.f32 %v268, %v274
        %v297 = vadd.f32 %v295, %v283
        %v298 = vadd.f32 %v296, %v284
        %v299 = vadd.f32 %v297, %v293
        %v300 = vadd.f32 %v298, %v294
        %v301 = vmul.f32 %v259, 4.0
        %v302 = vmul.f32 %v260, 4.0
        %v303 = vsub.f32 %v299, %v301
        %v304 = vsub.f32 %v300, %v302
        %v305 = vtanh.pop %v303
        %v306 = vtanh.pop %v304
        %v307 = vmul.f32 %v239, %v259
        %v308 = vmul.f32 %v240, %v260
        %v309 = vsub.f32 %v305, %v307
        %v310 = vsub.f32 %v306, %v308
        %v311 = vmul.f32 %v241, %v261
        %v312 = vmul.f32 %v242, %v262
        %v313 = vsub.f32 %v309, %v311
        %v314 = vsub.f32 %v310, %v312
        %v315 = vmul.f32 %v313, 0.5
        %v316 = vmul.f32 %v314, 0.5
        %v317 = vadd.f32 %v261, %v315
        %v318 = vadd.f32 %v262, %v316
        %v319 = vmul.f32 %v317, 0.5
        %v320 = vmul.f32 %v318, 0.5
        %v321 = vadd.f32 %v259, %v319
        %v322 = vadd.f32 %v260, %v320
        %323 = vst [vmem:[%s227] sm:$0xff] %v321
        %324 = vst [vmem:[%s227 + $0x8] sm:$0xff] %v322
        %v325 = vrot.slane %v321, 7
        %v326 = vrot.slane %v322, 7
        %v327 = vsel %vm267, %v325, %v326
        %v328 = vsel %vm267, %v326, %v325
        %v329 = vrot.slane %v321, 1
        %v330 = vrot.slane %v322, 1
        %v331 = vsel %vm272, %v329, %v330
        %v332 = vsel %vm272, %v330, %v329
        %333 = vrot.lane.b32.xlu0 %v321, 113
        %v334 = vpop.permute.xlu0 %333
        %335 = vrot.lane.b32.xlu0 %v322, 113
        %v336 = vpop.permute.xlu0 %335
        %337 = vrot.lane.b32.xlu0 %v321, 1
        %v338 = vpop.permute.xlu0 %337
        %339 = vrot.lane.b32.xlu0 %v322, 1
        %v340 = vpop.permute.xlu0 %339
        %v341 = vsel %vm257, %v334, %v338
        %v342 = vsel %vm257, %v336, %v340
        %343 = vrot.lane.b32.xlu0 %v321, 15
        %v344 = vpop.permute.xlu0 %343
        %345 = vrot.lane.b32.xlu0 %v322, 15
        %v346 = vpop.permute.xlu0 %345
        %347 = vrot.lane.b32.xlu0 %v321, 127
        %v348 = vpop.permute.xlu0 %347
        %349 = vrot.lane.b32.xlu0 %v322, 127
        %v350 = vpop.permute.xlu0 %349
        %v351 = vsel %vm258, %v344, %v348
        %v352 = vsel %vm258, %v346, %v350
        %v353 = vadd.f32 %v328, %v331
        %v354 = vadd.f32 %v327, %v332
        %v355 = vadd.f32 %v353, %v341
        %v356 = vadd.f32 %v354, %v342
        %v357 = vadd.f32 %v355, %v351
        %v358 = vadd.f32 %v356, %v352
        %v359 = vmul.f32 %v321, 4.0
        %v360 = vmul.f32 %v322, 4.0
        %v361 = vsub.f32 %v357, %v359
        %v362 = vsub.f32 %v358, %v360
        %v363 = vtanh.pop %v361
        %v364 = vtanh.pop %v362
        %v365 = vmul.f32 %v239, %v321
        %v366 = vmul.f32 %v240, %v322
        %v367 = vsub.f32 %v363, %v365
        %v368 = vsub.f32 %v364, %v366
        %v369 = vmul.f32 %v241, %v317
        %v370 = vmul.f32 %v242, %v318
        %v371 = vsub.f32 %v367, %v369
        %v372 = vsub.f32 %v368, %v370
        %v373 = vmul.f32 %v371, 0.5
        %v374 = vmul.f32 %v372, 0.5
        %v375 = vadd.f32 %v317, %v373
        %v376 = vadd.f32 %v318, %v374
        %v377 = vmul.f32 %v375, 0.5
        %v378 = vmul.f32 %v376, 0.5
        %v379 = vadd.f32 %v321, %v377
        %v380 = vadd.f32 %v322, %v378
        %s381 = scalar_lea.vmem %s227, 16 [#allocation10]
        %382 = vst [vmem:[%s381] sm:$0xff] %v379
        %383 = vst [vmem:[%s381 + $0x8] sm:$0xff] %v380
        %v384 = vrot.slane %v379, 7
        %v385 = vrot.slane %v380, 7
        %v386 = vsel %vm267, %v384, %v385
        %v387 = vsel %vm267, %v385, %v384
        %v388 = vrot.slane %v379, 1
        %v389 = vrot.slane %v380, 1
        %v390 = vsel %vm272, %v388, %v389
        %v391 = vsel %vm272, %v389, %v388
        %392 = vrot.lane.b32.xlu0 %v379, 113
        %v393 = vpop.permute.xlu0 %392
        %394 = vrot.lane.b32.xlu0 %v380, 113
        %v395 = vpop.permute.xlu0 %394
        %396 = vrot.lane.b32.xlu0 %v379, 1
        %v397 = vpop.permute.xlu0 %396
        %398 = vrot.lane.b32.xlu0 %v380, 1
        %v399 = vpop.permute.xlu0 %398
        %v400 = vsel %vm257, %v393, %v397
        %v401 = vsel %vm257, %v395, %v399
        %402 = vrot.lane.b32.xlu0 %v379, 15
        %v403 = vpop.permute.xlu0 %402
        %404 = vrot.lane.b32.xlu0 %v380, 15
        %v405 = vpop.permute.xlu0 %404
        %406 = vrot.lane.b32.xlu0 %v379, 127
        %v407 = vpop.permute.xlu0 %406
        %408 = vrot.lane.b32.xlu0 %v380, 127
        %v409 = vpop.permute.xlu0 %408
        %v410 = vsel %vm258, %v403, %v407
        %v411 = vsel %vm258, %v405, %v409
        %v412 = vadd.f32 %v387, %v390
        %v413 = vadd.f32 %v386, %v391
        %v414 = vadd.f32 %v412, %v400
        %v415 = vadd.f32 %v413, %v401
        %v416 = vadd.f32 %v414, %v410
        %v417 = vadd.f32 %v415, %v411
        %v418 = vmul.f32 %v379, 4.0
        %v419 = vmul.f32 %v380, 4.0
        %v420 = vsub.f32 %v416, %v418
        %v421 = vsub.f32 %v417, %v419
        %v422 = vtanh.pop %v420
        %v423 = vtanh.pop %v421
        %v424 = vmul.f32 %v239, %v379
        %v425 = vmul.f32 %v240, %v380
        %v426 = vsub.f32 %v422, %v424
        %v427 = vsub.f32 %v423, %v425
        %v428 = vmul.f32 %v241, %v375
        %v429 = vmul.f32 %v242, %v376
        %v430 = vsub.f32 %v426, %v428
        %v431 = vsub.f32 %v427, %v429
        %v432 = vmul.f32 %v430, 0.5
        %v433 = vmul.f32 %v431, 0.5
        %v434 = vadd.f32 %v375, %v432
        %v435 = vadd.f32 %v376, %v433
        %v436 = vmul.f32 %v434, 0.5
        %v437 = vmul.f32 %v435, 0.5
        %v438 = vadd.f32 %v379, %v436
        %v439 = vadd.f32 %v380, %v437
        %s440 = scalar_lea.vmem %s227, 32 [#allocation10]
        %441 = vst [vmem:[%s440] sm:$0xff] %v438
        %442 = vst [vmem:[%s440 + $0x8] sm:$0xff] %v439
        %v443 = vrot.slane %v438, 7
        %v444 = vrot.slane %v439, 7
        %v445 = vsel %vm267, %v443, %v444
        %v446 = vsel %vm267, %v444, %v443
        %v447 = vrot.slane %v438, 1
        %v448 = vrot.slane %v439, 1
        %v449 = vsel %vm272, %v447, %v448
        %v450 = vsel %vm272, %v448, %v447
        %451 = vrot.lane.b32.xlu0 %v438, 113
        %v452 = vpop.permute.xlu0 %451
        %453 = vrot.lane.b32.xlu0 %v439, 113
        %v454 = vpop.permute.xlu0 %453
        %455 = vrot.lane.b32.xlu0 %v438, 1
        %v456 = vpop.permute.xlu0 %455
        %457 = vrot.lane.b32.xlu0 %v439, 1
        %v458 = vpop.permute.xlu0 %457
        %v459 = vsel %vm257, %v452, %v456
        %v460 = vsel %vm257, %v454, %v458
        %461 = vrot.lane.b32.xlu0 %v438, 15
        %v462 = vpop.permute.xlu0 %461
        %463 = vrot.lane.b32.xlu0 %v439, 15
        %v464 = vpop.permute.xlu0 %463
        %465 = vrot.lane.b32.xlu0 %v438, 127
        %v466 = vpop.permute.xlu0 %465
        %467 = vrot.lane.b32.xlu0 %v439, 127
        %v468 = vpop.permute.xlu0 %467
        %v469 = vsel %vm258, %v462, %v466
        %v470 = vsel %vm258, %v464, %v468
        %v471 = vadd.f32 %v446, %v449
        %v472 = vadd.f32 %v445, %v450
        %v473 = vadd.f32 %v471, %v459
        %v474 = vadd.f32 %v472, %v460
        %v475 = vadd.f32 %v473, %v469
        %v476 = vadd.f32 %v474, %v470
        %v477 = vmul.f32 %v438, 4.0
        %v478 = vmul.f32 %v439, 4.0
        %v479 = vsub.f32 %v475, %v477
        %v480 = vsub.f32 %v476, %v478
        %v481 = vtanh.pop %v479
        %v482 = vtanh.pop %v480
        %v483 = vmul.f32 %v239, %v438
        %v484 = vmul.f32 %v240, %v439
        %v485 = vsub.f32 %v481, %v483
        %v486 = vsub.f32 %v482, %v484
        %v487 = vmul.f32 %v241, %v434
        %v488 = vmul.f32 %v242, %v435
        %v489 = vsub.f32 %v485, %v487
        %v490 = vsub.f32 %v486, %v488
        %v491 = vmul.f32 %v489, 0.5
        %v492 = vmul.f32 %v490, 0.5
        %v493 = vadd.f32 %v434, %v491
        %v494 = vadd.f32 %v435, %v492
        %v495 = vmul.f32 %v493, 0.5
        %v496 = vmul.f32 %v494, 0.5
        %v497 = vadd.f32 %v438, %v495
        %v498 = vadd.f32 %v439, %v496
        %s499 = scalar_lea.vmem %s227, 48 [#allocation10]
        %500 = vst [vmem:[%s499] sm:$0xff] %v497
        %501 = vst [vmem:[%s499 + $0x8] sm:$0xff] %v498
        %502 = vst [vmem:[#allocation2] sm:$0xff] %v497
        %503 = vst [vmem:[#allocation2 + $0x8] sm:$0xff] %v498
        %504 = vst [vmem:[#allocation3] sm:$0xff] %v493
        %505 = vst [vmem:[#allocation3 + $0x8] sm:$0xff] %v494
        %s506 = sand.u32 %s119, 1
        %s507 = scalar_lea.sflag [#allocation6], %s506
        %s508 = sand.u32 %s119, 1
        %s509 = smul.addr %s508, 64
        %s510 = scalar_lea.vmem [#allocation10], %s509
        // Predicated region
        $region49: #{tpu_custom_call.1} parent=31 // pred_check
          %p511 = pneg %p129
        $region50: #{tpu_custom_call.1} parent=31 // pred_check_branch
          %513 = sbr.rel (%p511) target = $region52
        $region51: #{tpu_custom_call.1} parent=31 // pred_region
          %s514 = smul.u32 4, %s24
          %s516 = ssub.s32 1024, 1024
          %517 = vsyncadd %s507, %s516
          %s518 = smul.addr %s514, 2
          %s519 = sadd.s32 %s23, %s518
          %s520 = smul.addr %s519, 128
          %s521 = scalar_lea.hbm %s3, %s520
          %s522 = sshll.u32 %s510, 4
          %s523 = int_to_ptr.vmem [resolvable:$true] %s522
          %528 = dma.vmem_to_hbm [thread:$0]  %s523, 1024, %s521, %s507, 128, 128, 8
        $region52: #{tpu_custom_call.1} parent=31 // pred_fallthru
          _
      $region32: #{tpu_custom_call.1} parent=5 // pred_fallthru
        _
      %p529 = scmp.le.s32.totalorder 2, %s14
      // Predicated region
      $region53: #{tpu_custom_call.1} parent=5 // pred_check
        %p530 = pneg %p529
      $region54: #{tpu_custom_call.1} parent=5 // pred_check_branch
        %532 = sbr.rel (%p530) target = $region56
      $region55: #{tpu_custom_call.1} parent=5 // pred_region
        %s533 = ssub.s32 %s14, 2
        // Predicated region
        $region57: #{tpu_custom_call.1} parent=55 // pred_check
          %p534 = pneg %p135
        $region58: #{tpu_custom_call.1} parent=55 // pred_check_branch
          %536 = sbr.rel (%p534) target = $region60
        $region59: #{tpu_custom_call.1} parent=55 // pred_region
          %s537 = sand.u32 %s120, 1
          %s538 = scalar_lea.sflag [#allocation6], %s537
          %s539 = sand.u32 %s120, 1
          %s540 = smul.addr %s539, 64
          %s541 = scalar_lea.vmem [#allocation10], %s540
          %542 = dma.done %s538, 1024
        $region60: #{tpu_custom_call.1} parent=55 // pred_fallthru
          _
      $region56: #{tpu_custom_call.1} parent=5 // pred_fallthru
        _
    $region6: #{tpu_custom_call.1} parent=1 // loop_footer
      %s18 = sadd.s32 1, %s14
    $region7: #{tpu_custom_call.1} parent=1 // loop_footer_branch
      %13 = sbr.rel target = $region3
    $region8: #{tpu_custom_call.1} parent=1 // loop_exit
      _
    %543 = vsyncpa [#allocation5], 1
    %s544 = scalar_lea.sflag [#allocation5], 1
    %545 = vsyncpa %s544, 1
    %546 = vsyncpa [#allocation8], 1
    %547 = vsyncpa [#allocation6], 1
    %s548 = scalar_lea.sflag [#allocation6], 1
    %549 = vsyncpa %s548, 1

</llo_original>
